<compile_context>
chip_gen: v5e
topology: v5e:2x2
jax: 0.10.0
libtpu: 0.0.40
codegen_flags: <defaults>
</compile_context>

<pallas_src>
import jax
import jax.numpy as jnp
from jax.experimental import pallas as pl
from jax.experimental.pallas import tpu as pltpu


def _copy_kernel(x_ref, y_ref):
    # Straight VMEM load -> VMEM store (identity / record).
    y_ref[...] = x_ref[...]


# ~4 MiB blocks sit on the 85-86%-of-roofline plateau for mem-bound copies.
# in+out are double-buffered => ~4 x block_bytes of VMEM, well under the
# 32 MiB scoped limit we request (safe on v5e/v6e 128 MiB and v7x 64 MiB).
_TARGET_BLOCK_BYTES = 4 * 1024 * 1024
_VMEM_LIMIT_BYTES = 32 * 1024 * 1024
_LANE = 128


def _sublane(dtype):
    # Sublane packing per dtype width (f32:8, bf16:16, int8/fp8:32).
    return {4: 8, 2: 16, 1: 32}.get(jnp.dtype(dtype).itemsize, 8)


def _run_copy(view, block_shape, grid, index_map):
    return pl.pallas_call(
        _copy_kernel,
        out_shape=jax.ShapeDtypeStruct(view.shape, view.dtype),
        grid_spec=pltpu.PrefetchScalarGridSpec(
            num_scalar_prefetch=0,
            grid=grid,
            in_specs=[pl.BlockSpec(block_shape, index_map)],
            out_specs=pl.BlockSpec(block_shape, index_map),
        ),
        # Let XLA alias/donate the input HBM buffer for the output.
        input_output_aliases={0: 0},
        compiler_params=pltpu.CompilerParams(
            dimension_semantics=("parallel",),
            vmem_limit_bytes=_VMEM_LIMIT_BYTES,
        ),
    )(view)


def recorder_forward(x, *, materialize_copy=False):
    """Functional equivalent of Recorder.forward.

    Returns (output, embedding).  Default path is the zero-cost identity
    `return x, x` (the module does no compute).  `materialize_copy=True`
    routes through the Pallas identity-copy kernel, which costs exactly one
    HBM read + one HBM write of the array.
    """
    if not materialize_copy or x.size == 0:
        return x, x

    n = int(x.size)
    itemsize = jnp.dtype(x.dtype).itemsize
    sub = _sublane(x.dtype)

    if n % _LANE == 0:
        # Lane-dense 2D view: pick the largest convenient lane width that
        # divides the flattened size, then tile rows bounded by block bytes.
        cols = _LANE
        for c in (4096, 2048, 1024, 512, 256, 128):
            if n % c == 0:
                cols = c
                break
        rows = n // cols
        view = x.reshape(rows, cols)

        budget_rows = max(1, _TARGET_BLOCK_BYTES // (cols * itemsize))
        if rows <= budget_rows:
            rows_per_block = rows  # single full-extent block (exempt from 8|rows)
        else:
            rows_per_block = max(sub, (budget_rows // sub) * sub)
        grid = (pl.cdiv(rows, rows_per_block),)
        y = _run_copy(view, (rows_per_block, cols), grid, lambda i: (i, 0))
    else:
        # Fallback for sizes not divisible by 128: flat (1, N) view tiled along
        # lanes.  Sublane dim pads to 8 in VMEM, so budget accounts for 8x.
        view = x.reshape(1, n)
        if n * itemsize * 8 <= _TARGET_BLOCK_BYTES:
            lane_block = n  # single full-extent block (exempt from 128|lanes)
        else:
            lane_block = max(
                _LANE, ((_TARGET_BLOCK_BYTES // (8 * itemsize)) // _LANE) * _LANE
            )
        grid = (pl.cdiv(n, lane_block),)
        y = _run_copy(view, (1, lane_block), grid, lambda i: (0, i))

    y = y.reshape(x.shape)
    embedding = y  # the "recorded" input, identical to the forwarded value
    return y, embedding


if __name__ == "__main__":
    key = jax.random.PRNGKey(0)
    # Small NCHW input consistent with a typical feature map: (2, 4, 16, 16).
    x = jax.random.normal(key, (2, 4, 16, 16), dtype=jnp.float32)

    # Zero-cost default path (what a real deployment should use).
    y0, emb0 = recorder_forward(x)
    assert y0 is x and emb0 is x

    # Kernel path: materialized identity copy through Pallas.
    y, emb = recorder_forward(x, materialize_copy=True)
    y = jax.block_until_ready(y)
    emb = jax.block_until_ready(emb)

    assert y.shape == x.shape and y.dtype == x.dtype
    assert bool(jnp.all(y == x))
    assert bool(jnp.all(emb == x))
    print("KERNEL_OK")
</pallas_src>

<mosaic_0001>
module attributes {stable_mosaic.version = 11 : i64} {
  func.func @_copy_kernel(%arg0: i32, %arg1: memref<1x2048xf32, #tpu.memory_space<vmem>>, %arg2: memref<1x2048xf32, #tpu.memory_space<vmem>>) attributes {dimension_semantics = [#tpu.dimension_semantics<parallel>], iteration_bounds = array<i64: 1>, scalar_prefetch = 0 : i64, scratch_operands = 0 : i64, tpu.core_type = #tpu.core_type<tc>, window_params = [{transform_indices = @transform_0, window_bounds = array<i64: 1, 2048>}, {transform_indices = @transform_1, window_bounds = array<i64: 1, 2048>}]} {
    %c0 = arith.constant 0 : index
    %c0_0 = arith.constant 0 : index
    %0 = vector.load %arg1[%c0, %c0_0] : memref<1x2048xf32, #tpu.memory_space<vmem>>, vector<1x2048xf32>
    %c0_1 = arith.constant 0 : index
    %c0_2 = arith.constant 0 : index
    %1 = vector.load %arg2[%c0_1, %c0_2] : memref<1x2048xf32, #tpu.memory_space<vmem>>, vector<1x2048xf32>
    tpu.vector_store %arg2[%c0_1, %c0_2], %0 {strides = array<i32>} : memref<1x2048xf32, #tpu.memory_space<vmem>>, vector<1x2048xf32>,
    return
  }
  func.func @transform_0(%arg0: i32) -> (i32, i32) {
    %c0_i32 = arith.constant 0 : i32
    %c0_i32_0 = arith.constant 0 : i32
    return %arg0, %c0_i32 : i32, i32
  }
  func.func @transform_1(%arg0: i32) -> (i32, i32) {
    %c0_i32 = arith.constant 0 : i32
    %c0_i32_0 = arith.constant 0 : i32
    return %arg0, %c0_i32 : i32, i32
  }
}

</mosaic_0001>

<llo_original>
// kernel: tpu_custom_call.1
$region0: #{tpu_custom_call.1}
  #allocation0 [shape = 'u32[]', space=smem, size = 0x4, offset = 0x4, fixed_abs, tag = 'smem constant byte address 0x4 - core index']
  #allocation1 [shape = 'u32[72,128]{1,0:T(1,128)}', space=vmem, size = 0x9000, scoped, tag = 'internal scratch']
  %s0 = inlined_call_operand.hbm [shape: f32[1,2048], index: 0, kind: input, shape index: {}, may-alias: {0,1}]
  %s1 = inlined_call_operand.hbm [shape: f32[1,2048], index: 1, kind: output, shape index: {}, may-alias: {0,1}]
  %s2 = sld [smem:[#allocation0]]
  $region18: #{tpu_custom_call.1} parent=0
    _
  %s4 = ssub.s32 1, %s2
  %s5 = scalar_select 0, %s4, %s2
  $region1: #{tpu_custom_call.1} parent=0
    #allocation2 [shape = 'u8[8192]{0}', space=vmem, size = 0x2000, scoped, tag = 'input window, operand 0, single buffered']
    #allocation3 [shape = 's32[1]{0}', space=sflag, size = 0x4, scoped, tag = 'scoped memory for tpu_custom_call.1']
    #allocation4 [shape = 's32[1]{0}', space=sflag, size = 0x4, scoped, tag = 'scoped memory for tpu_custom_call.1']
    #allocation5 [shape = 'u8[8192]{0}', space=vmem, size = 0x2000, scoped, tag = 'output window, operand 0, single buffered']
    %6 = vsyncpa [#allocation3], 0
    %7 = vsyncpa [#allocation4], 0
    // Predicated region
    $region2: #{tpu_custom_call.1} parent=1 // pred_check
      _
    $region3: #{tpu_custom_call.1} parent=1 // pred_check_branch
      %9 = sbr.rel (0) target = $region5
    $region4: #{tpu_custom_call.1} parent=1 // pred_region
      %11 = vsyncadd [#allocation3], 0
      %s13 = sshll.u32 %s0, 4
      %s14 = int_to_ptr.hbm [resolvable:$true] %s13
      %s15 = sshll.u32 [#allocation2], 4
      %s16 = int_to_ptr.vmem [resolvable:$true] %s15
      %18 = dma.hbm_to_vmem [thread:$0]  %s14, 256, %s16, [#allocation3]
    $region5: #{tpu_custom_call.1} parent=1 // pred_fallthru
      _
    // Predicated region
    $region6: #{tpu_custom_call.1} parent=1 // pred_check
      _
    $region7: #{tpu_custom_call.1} parent=1 // pred_check_branch
      %20 = sbr.rel (0) target = $region9
    $region8: #{tpu_custom_call.1} parent=1 // pred_region
      %22 = dma.done [#allocation3], 256
    $region9: #{tpu_custom_call.1} parent=1 // pred_fallthru
      _
    %v23 = vld [vmem:[#allocation2] sm:$0xff]
    %v24 = vld [vmem:[#allocation2 + $0x8] sm:$0xff]
    %25 = vst [vmem:[#allocation5] sm:$0xff] %v23
    %26 = vst [vmem:[#allocation5 + $0x8] sm:$0xff] %v24
    // Predicated region
    $region10: #{tpu_custom_call.1} parent=1 // pred_check
      _
    $region11: #{tpu_custom_call.1} parent=1 // pred_check_branch
      %28 = sbr.rel (0) target = $region13
    $region12: #{tpu_custom_call.1} parent=1 // pred_region
      %30 = vsyncadd [#allocation4], 0
      %s32 = sshll.u32 [#allocation5], 4
      %s33 = int_to_ptr.vmem [resolvable:$true] %s32
      %s34 = sshll.u32 %s1, 4
      %s35 = int_to_ptr.hbm [resolvable:$true] %s34
      %37 = dma.vmem_to_hbm [thread:$0]  %s33, 256, %s35, [#allocation4]
    $region13: #{tpu_custom_call.1} parent=1 // pred_fallthru
      _
    // Predicated region
    $region14: #{tpu_custom_call.1} parent=1 // pred_check
      _
    $region15: #{tpu_custom_call.1} parent=1 // pred_check_branch
      %39 = sbr.rel (0) target = $region17
    $region16: #{tpu_custom_call.1} parent=1 // pred_region
      %41 = dma.done [#allocation4], 256
    $region17: #{tpu_custom_call.1} parent=1 // pred_fallthru
      _
    %42 = vsyncpa [#allocation3], 1
    %43 = vsyncpa [#allocation4], 1

</llo_original>
